<compile_context>
chip_gen: v7x
topology: tpu7x:2x2x1
jax: 0.10.0
libtpu: 0.0.40
codegen_flags: <defaults>
</compile_context>

<pallas_src>
import jax
import jax.numpy as jnp
from jax.experimental import pallas as pl
from jax.experimental.pallas import tpu as pltpu


MAX_TB = 1024  # max batch rows per grid step; tiny VMEM footprint at these dims


def _round_up(x: int, m: int) -> int:
    return ((x + m - 1) // m) * m


def mlp_kernel(x_ref, w1_ref, b1_ref, w2_ref, b2_ref, o_ref):
    # x_ref: (TB, in) f32, weights bf16, biases (1, N) f32, output (TB, out) f32.
    x = x_ref[...].astype(w1_ref.dtype)  # f32 -> bf16 on the VPU (in-kernel, free)
    # First matmul on the MXU, f32 accumulation.
    h = jnp.dot(x, w1_ref[...], preferred_element_type=jnp.float32)
    # f32 epilogue: bias + ReLU (bias broadcast (1, inter) -> (TB, inter)).
    h = jnp.maximum(h + b1_ref[...], 0.0)
    # Second matmul: cast activations to bf16 for the MXU, accumulate in f32.
    y = jnp.dot(h.astype(w2_ref.dtype), w2_ref[...],
                preferred_element_type=jnp.float32)
    o_ref[...] = (y + b2_ref[...]).astype(o_ref.dtype)


def prepare_mlp_params(w1, b1, w2, b2):
    """One-time parameter prep, hoisted out of the per-call path.

    w1: [in_dim, inter], b1: [inter], w2: [inter, out_dim], b2: [out_dim]
    (weights are nn.Linear.weight transposed).  Matmul operands go to bf16 for
    the MXU; biases stay f32 as (1, N) rows for the f32 epilogue.
    """
    return (w1.astype(jnp.bfloat16),
            b1.reshape(1, -1).astype(jnp.float32),
            w2.astype(jnp.bfloat16),
            b2.reshape(1, -1).astype(jnp.float32))


def mlp_forward(x, params):
    """x: [B, in_dim] f32; params from prepare_mlp_params -> [B, out_dim] f32."""
    w1p, b1p, w2p, b2p = params
    B, in_dim = x.shape
    inter = w1p.shape[1]
    out_dim = w2p.shape[1]

    # Batch tile: one big tile (grid=(1,)) whenever it fits; otherwise 1024-row
    # tiles.  Per-grid-step overhead (~0.35 us) dominates at toy sizes, so fewer
    # steps win on the serial v5e/v6e grid.
    if B <= MAX_TB:
        TB = _round_up(max(B, 8), 8)
    else:
        TB = MAX_TB
    B_pad = _round_up(B, TB)

    x_in = x
    if B_pad != B:
        # Padded rows produce garbage (relu(b1) @ w2 + b2), not zeros; they are
        # sliced off below.  Never reduce over the padded output.
        x_in = jnp.zeros((B_pad, in_dim), x.dtype).at[:B].set(x)

    grid = (B_pad // TB,)

    out = pl.pallas_call(
        mlp_kernel,
        out_shape=jax.ShapeDtypeStruct((B_pad, out_dim), jnp.float32),
        grid_spec=pltpu.PrefetchScalarGridSpec(
            num_scalar_prefetch=0,
            grid=grid,
            in_specs=[
                # activations: one batch tile per grid step (pipelined)
                pl.BlockSpec((TB, in_dim), lambda i: (i, 0)),
                # weights / biases: constant index_map -> resident in VMEM
                pl.BlockSpec((in_dim, inter), lambda i: (0, 0)),
                pl.BlockSpec((1, inter), lambda i: (0, 0)),
                pl.BlockSpec((inter, out_dim), lambda i: (0, 0)),
                pl.BlockSpec((1, out_dim), lambda i: (0, 0)),
            ],
            # unpadded lane width: masked stores, but 16x less HBM writeback
            out_specs=pl.BlockSpec((TB, out_dim), lambda i: (i, 0)),
        ),
        compiler_params=pltpu.CompilerParams(
            # independent batch tiles; only matters when grid > 1 (megacore)
            dimension_semantics=("parallel",),
        ),
    )(x_in, w1p, b1p, w2p, b2p)

    if B_pad != B:
        out = out[:B]
    return out


if __name__ == "__main__":
    # Shapes consistent with the module: MLP(in_dim=16, out_dim=8, intermediate_dim=32)
    B, in_dim, inter, out_dim = 256, 16, 32, 8

    key = jax.random.PRNGKey(0)
    kx, k1, kb1, k2, kb2 = jax.random.split(key, 5)

    x = jax.random.normal(kx, (B, in_dim), dtype=jnp.float32)

    # PyTorch Linear-style uniform init (bound 1/sqrt(fan_in)), stored transposed
    # relative to nn.Linear.weight so the kernel computes x @ W directly.
    bound1 = 1.0 / jnp.sqrt(in_dim)
    w1 = jax.random.uniform(k1, (in_dim, inter), jnp.float32, -bound1, bound1)
    b1 = jax.random.uniform(kb1, (inter,), jnp.float32, -bound1, bound1)

    bound2 = 1.0 / jnp.sqrt(inter)
    w2 = jax.random.uniform(k2, (inter, out_dim), jnp.float32, -bound2, bound2)
    b2 = jax.random.uniform(kb2, (out_dim,), jnp.float32, -bound2, bound2)

    # One-time parameter prep (outside the per-call path).
    params = jax.tree_util.tree_map(jax.block_until_ready,
                                    prepare_mlp_params(w1, b1, w2, b2))

    fwd = jax.jit(mlp_forward)
    out = fwd(x, params)
    out = jax.block_until_ready(out)
    assert out.shape == (B, out_dim)

    # Reference matching the kernel's numerics (bf16 matmul operands, f32 accum).
    bf16 = jnp.bfloat16
    h_ref = jnp.dot(x.astype(bf16), w1.astype(bf16),
                    preferred_element_type=jnp.float32) + b1[None, :]
    h_ref = jnp.maximum(h_ref, 0.0)
    y_ref = jnp.dot(h_ref.astype(bf16), w2.astype(bf16),
                    preferred_element_type=jnp.float32) + b2[None, :]
    assert jnp.allclose(out, y_ref, atol=1e-3, rtol=1e-3), (
        float(jnp.max(jnp.abs(out - y_ref))))

    # Sanity vs pure-f32 math (loose tolerance for the deliberate bf16 cast).
    f32_ref = jnp.maximum(x @ w1 + b1[None, :], 0.0) @ w2 + b2[None, :]
    assert jnp.allclose(out, f32_ref, atol=5e-2, rtol=5e-2)

    # Exercise the batch-padding path once (B not a multiple of the tile).
    out_odd = jax.block_until_ready(mlp_forward(x[:37], params))
    assert out_odd.shape == (37, out_dim)
    assert jnp.allclose(out_odd, y_ref[:37], atol=1e-3, rtol=1e-3)

    print("KERNEL_OK")
</pallas_src>

<mosaic_0001>
module attributes {stable_mosaic.version = 11 : i64} {
  func.func @mlp_kernel(%arg0: i32, %arg1: memref<256x16xf32, #tpu.memory_space<vmem>>, %arg2: memref<16x32xbf16, #tpu.memory_space<vmem>>, %arg3: memref<1x32xf32, #tpu.memory_space<vmem>>, %arg4: memref<32x8xbf16, #tpu.memory_space<vmem>>, %arg5: memref<1x8xf32, #tpu.memory_space<vmem>>, %arg6: memref<256x8xf32, #tpu.memory_space<vmem>>) attributes {dimension_semantics = [#tpu.dimension_semantics<parallel>], iteration_bounds = array<i64: 1>, scalar_prefetch = 0 : i64, scratch_operands = 0 : i64, tpu.core_type = #tpu.core_type<tc>, window_params = [{transform_indices = @transform_0, window_bounds = array<i64: 256, 16>}, {pipeline_mode = #tpu.pipeline_mode<synchronous>, transform_indices = @transform_1, window_bounds = array<i64: 16, 32>}, {pipeline_mode = #tpu.pipeline_mode<synchronous>, transform_indices = @transform_2, window_bounds = array<i64: 1, 32>}, {pipeline_mode = #tpu.pipeline_mode<synchronous>, transform_indices = @transform_3, window_bounds = array<i64: 32, 8>}, {pipeline_mode = #tpu.pipeline_mode<synchronous>, transform_indices = @transform_4, window_bounds = array<i64: 1, 8>}, {transform_indices = @transform_5, window_bounds = array<i64: 256, 8>}]} {
    %c0 = arith.constant 0 : index
    %c0_0 = arith.constant 0 : index
    %0 = vector.load %arg1[%c0, %c0_0] : memref<256x16xf32, #tpu.memory_space<vmem>>, vector<256x16xf32>
    %1 = arith.truncf %0 : vector<256x16xf32> to vector<256x16xbf16>
    %c0_1 = arith.constant 0 : index
    %c0_2 = arith.constant 0 : index
    %2 = vector.load %arg2[%c0_1, %c0_2] : memref<16x32xbf16, #tpu.memory_space<vmem>>, vector<16x32xbf16>
    %cst = arith.constant dense<0.000000e+00> : vector<256x32xf32>
    %3 = tpu.matmul %1, %2, %cst {dimension_numbers = #tpu.dot_dimension_numbers<[1], [0], [0], [1], [0, 0, 1, 1], [], []>} : vector<256x16xbf16>, vector<16x32xbf16>, vector<256x32xf32> -> vector<256x32xf32>
    %c0_3 = arith.constant 0 : index
    %c0_4 = arith.constant 0 : index
    %4 = vector.load %arg3[%c0_3, %c0_4] : memref<1x32xf32, #tpu.memory_space<vmem>>, vector<1x32xf32>
    %5 = vector.broadcast %4 : vector<1x32xf32> to vector<256x32xf32>
    %6 = arith.addf %3, %5 : vector<256x32xf32>
    %cst_5 = arith.constant 0.000000e+00 : f32
    %7 = vector.broadcast %cst_5 : f32 to vector<256x32xf32>
    %8 = arith.maximumf %6, %7 : vector<256x32xf32>
    %9 = arith.truncf %8 : vector<256x32xf32> to vector<256x32xbf16>
    %c0_6 = arith.constant 0 : index
    %c0_7 = arith.constant 0 : index
    %10 = vector.load %arg4[%c0_6, %c0_7] : memref<32x8xbf16, #tpu.memory_space<vmem>>, vector<32x8xbf16>
    %cst_8 = arith.constant dense<0.000000e+00> : vector<256x8xf32>
    %11 = tpu.matmul %9, %10, %cst_8 {dimension_numbers = #tpu.dot_dimension_numbers<[1], [0], [0], [1], [0, 0, 1, 1], [], []>} : vector<256x32xbf16>, vector<32x8xbf16>, vector<256x8xf32> -> vector<256x8xf32>
    %c0_9 = arith.constant 0 : index
    %c0_10 = arith.constant 0 : index
    %12 = vector.load %arg5[%c0_9, %c0_10] : memref<1x8xf32, #tpu.memory_space<vmem>>, vector<1x8xf32>
    %13 = vector.broadcast %12 : vector<1x8xf32> to vector<256x8xf32>
    %14 = arith.addf %11, %13 : vector<256x8xf32>
    %c0_11 = arith.constant 0 : index
    %c0_12 = arith.constant 0 : index
    %15 = vector.load %arg6[%c0_11, %c0_12] : memref<256x8xf32, #tpu.memory_space<vmem>>, vector<256x8xf32>
    tpu.vector_store %arg6[%c0_11, %c0_12], %14 {strides = array<i32>} : memref<256x8xf32, #tpu.memory_space<vmem>>, vector<256x8xf32>,
    return
  }
  func.func @transform_0(%arg0: i32) -> (i32, i32) {
    %c0_i32 = arith.constant 0 : i32
    %c0_i32_0 = arith.constant 0 : i32
    return %arg0, %c0_i32 : i32, i32
  }
  func.func @transform_1(%arg0: i32) -> (i32, i32) {
    %c0_i32 = arith.constant 0 : i32
    %c0_i32_0 = arith.constant 0 : i32
    %c0_i32_1 = arith.constant 0 : i32
    return %c0_i32, %c0_i32_0 : i32, i32
  }
  func.func @transform_2(%arg0: i32) -> (i32, i32) {
    %c0_i32 = arith.constant 0 : i32
    %c0_i32_0 = arith.constant 0 : i32
    %c0_i32_1 = arith.constant 0 : i32
    return %c0_i32, %c0_i32_0 : i32, i32
  }
  func.func @transform_3(%arg0: i32) -> (i32, i32) {
    %c0_i32 = arith.constant 0 : i32
    %c0_i32_0 = arith.constant 0 : i32
    %c0_i32_1 = arith.constant 0 : i32
    return %c0_i32, %c0_i32_0 : i32, i32
  }
  func.func @transform_4(%arg0: i32) -> (i32, i32) {
    %c0_i32 = arith.constant 0 : i32
    %c0_i32_0 = arith.constant 0 : i32
    %c0_i32_1 = arith.constant 0 : i32
    return %c0_i32, %c0_i32_0 : i32, i32
  }
  func.func @transform_5(%arg0: i32) -> (i32, i32) {
    %c0_i32 = arith.constant 0 : i32
    %c0_i32_0 = arith.constant 0 : i32
    return %arg0, %c0_i32 : i32, i32
  }
}

</mosaic_0001>

<llo_original>
// kernel: mlp_forward.1
$region0: #{mlp_forward.1}
  #allocation0 [shape = 'u32[]', space=smem, size = 0x4, offset = 0x4, fixed_abs, tag = 'smem constant byte address 0x4 - core index']
  #allocation1 [shape = 'u32[144,128]{1,0:T(1,128)}', space=vmem, size = 0x12000, scoped, tag = 'internal scratch']
  %s0 = inlined_call_operand.vmem [shape: f32[256,16], index: 0, kind: input, shape index: {}]
  %s1 = inlined_call_operand.vmem [shape: bf16[16,32], index: 1, kind: input, shape index: {}]
  %s2 = inlined_call_operand.vmem [shape: f32[1,32], index: 2, kind: input, shape index: {}]
  %s3 = inlined_call_operand.vmem [shape: bf16[32,8], index: 3, kind: input, shape index: {}]
  %s4 = inlined_call_operand.vmem [shape: f32[1,8], index: 4, kind: input, shape index: {}]
  %s5 = inlined_call_operand.vmem [shape: f32[256,8], index: 5, kind: output, shape index: {}]
  %s6 = sld [smem:[#allocation0]]
  $region30: #{mlp_forward.1} parent=0
    _
  %s8 = ssub.s32 1, %s6
  %s9 = scalar_select 0, %s8, %s6
  // Predicated region
  $region2: #{mlp_forward.1} parent=0 // pred_check
    _
  $region3: #{mlp_forward.1} parent=0 // pred_check_branch
    %11 = sbr.rel (0) target = $region5
  $region4: #{mlp_forward.1} parent=0 // pred_region
    _
  $region5: #{mlp_forward.1} parent=0 // pred_fallthru
    _
  // Predicated region
  $region6: #{mlp_forward.1} parent=0 // pred_check
    _
  $region7: #{mlp_forward.1} parent=0 // pred_check_branch
    %13 = sbr.rel (0) target = $region9
  $region8: #{mlp_forward.1} parent=0 // pred_region
    _
  $region9: #{mlp_forward.1} parent=0 // pred_fallthru
    _
  // Predicated region
  $region10: #{mlp_forward.1} parent=0 // pred_check
    _
  $region11: #{mlp_forward.1} parent=0 // pred_check_branch
    %15 = sbr.rel (0) target = $region13
  $region12: #{mlp_forward.1} parent=0 // pred_region
    _
  $region13: #{mlp_forward.1} parent=0 // pred_fallthru
    _
  // Predicated region
  $region14: #{mlp_forward.1} parent=0 // pred_check
    _
  $region15: #{mlp_forward.1} parent=0 // pred_check_branch
    %17 = sbr.rel (0) target = $region17
  $region16: #{mlp_forward.1} parent=0 // pred_region
    _
  $region17: #{mlp_forward.1} parent=0 // pred_fallthru
    _
  // Predicated region
  $region18: #{mlp_forward.1} parent=0 // pred_check
    _
  $region19: #{mlp_forward.1} parent=0 // pred_check_branch
    %19 = sbr.rel (0) target = $region21
  $region20: #{mlp_forward.1} parent=0 // pred_region
    _
  $region21: #{mlp_forward.1} parent=0 // pred_fallthru
    _
  %v21 = vld [vmem:[%s0] sm:$0xff]
  %v22 = vld [vmem:[%s0 + $0x8] sm:$0xff]
  %v23 = vld [vmem:[%s0 + $0x10] sm:$0xff]
  %v24 = vld [vmem:[%s0 + $0x18] sm:$0xff]
  %v25 = vld [vmem:[%s0 + $0x20] sm:$0xff]
  %v26 = vld [vmem:[%s0 + $0x28] sm:$0xff]
  %v27 = vld [vmem:[%s0 + $0x30] sm:$0xff]
  %v28 = vld [vmem:[%s0 + $0x38] sm:$0xff]
  %v29 = vld [vmem:[%s0 + $0x40] sm:$0xff]
  %v30 = vld [vmem:[%s0 + $0x48] sm:$0xff]
  %v31 = vld [vmem:[%s0 + $0x50] sm:$0xff]
  %v32 = vld [vmem:[%s0 + $0x58] sm:$0xff]
  %v33 = vld [vmem:[%s0 + $0x60] sm:$0xff]
  %v34 = vld [vmem:[%s0 + $0x68] sm:$0xff]
  %v35 = vld [vmem:[%s0 + $0x70] sm:$0xff]
  %v36 = vld [vmem:[%s0 + $0x78] sm:$0xff]
  %v37 = vld [vmem:[%s0 + $0x80] sm:$0xff]
  %v38 = vld [vmem:[%s0 + $0x88] sm:$0xff]
  %v39 = vld [vmem:[%s0 + $0x90] sm:$0xff]
  %v40 = vld [vmem:[%s0 + $0x98] sm:$0xff]
  %v41 = vld [vmem:[%s0 + $0xa0] sm:$0xff]
  %v42 = vld [vmem:[%s0 + $0xa8] sm:$0xff]
  %v43 = vld [vmem:[%s0 + $0xb0] sm:$0xff]
  %v44 = vld [vmem:[%s0 + $0xb8] sm:$0xff]
  %v45 = vld [vmem:[%s0 + $0xc0] sm:$0xff]
  %v46 = vld [vmem:[%s0 + $0xc8] sm:$0xff]
  %v47 = vld [vmem:[%s0 + $0xd0] sm:$0xff]
  %v48 = vld [vmem:[%s0 + $0xd8] sm:$0xff]
  %v49 = vld [vmem:[%s0 + $0xe0] sm:$0xff]
  %v50 = vld [vmem:[%s0 + $0xe8] sm:$0xff]
  %v51 = vld [vmem:[%s0 + $0xf0] sm:$0xff]
  %v52 = vld [vmem:[%s0 + $0xf8] sm:$0xff]
  %v53 = vpack.c.bf16 %v22, %v21
  %v54 = vpack.c.bf16 %v24, %v23
  %v55 = vpack.c.bf16 %v26, %v25
  %v56 = vpack.c.bf16 %v28, %v27
  %v57 = vpack.c.bf16 %v30, %v29
  %v58 = vpack.c.bf16 %v32, %v31
  %v59 = vpack.c.bf16 %v34, %v33
  %v60 = vpack.c.bf16 %v36, %v35
  %v61 = vpack.c.bf16 %v38, %v37
  %v62 = vpack.c.bf16 %v40, %v39
  %v63 = vpack.c.bf16 %v42, %v41
  %v64 = vpack.c.bf16 %v44, %v43
  %v65 = vpack.c.bf16 %v46, %v45
  %v66 = vpack.c.bf16 %v48, %v47
  %v67 = vpack.c.bf16 %v50, %v49
  %v68 = vpack.c.bf16 %v52, %v51
  %v69 = vld [vmem:[%s1] sm:$0xf]
  %v70 = vld [vmem:[%s1 + $0x4] sm:$0xf]
  %v71 = vld [vmem:[%s2] sm:$0x1]
  %v73 = vlaneseq
  %v74 = vshrl.u32 %v73, 7
  %v75 = vsub.s32 0, %v74
  %v76 = vrot.slane %v71, %v75
  %v80 = vunpack.c.l.b16 %v69
  %v81 = vunpack.c.l.b16 %v70
  %v82 = vpack.c.b16 %v81, %v80
  %vm84 = vcmask 130048
  %v86 = vsel %vm84, %v53, 0
  %v89 = vsel %vm84, %v54, 0
  %v92 = vsel %vm84, %v55, 0
  %v95 = vsel %vm84, %v56, 0
  %v98 = vsel %vm84, %v57, 0
  %v101 = vsel %vm84, %v58, 0
  %v104 = vsel %vm84, %v59, 0
  %v107 = vsel %vm84, %v60, 0
  %v110 = vsel %vm84, %v61, 0
  %v113 = vsel %vm84, %v62, 0
  %v116 = vsel %vm84, %v63, 0
  %v119 = vsel %vm84, %v64, 0
  %v122 = vsel %vm84, %v65, 0
  %v125 = vsel %vm84, %v66, 0
  %v128 = vsel %vm84, %v67, 0
  %v131 = vsel %vm84, %v68, 0
  %133 = vmatprep.subr.bf16.mxu0 0
  %134 = vmatpush1.bf16.msra.mxu0 %v82
  %135 = vmatprep.subr.bf16.mxu0 0
  %136 = vmatpush1.bf16.msra.mxu0 0
  %137 = vmatprep.subr.bf16.mxu0 0
  %138 = vmatpush1.bf16.msra.mxu0 0
  %139 = vmatprep.subr.bf16.mxu0 0
  %140 = vmatpush1.bf16.msra.mxu0 0
  %141 = vmatprep.subr.bf16.mxu0 0
  %142 = vmatpush1.bf16.msra.mxu0 0
  %143 = vmatprep.subr.bf16.mxu0 0
  %144 = vmatpush1.bf16.msra.mxu0 0
  %145 = vmatprep.subr.bf16.mxu0 0
  %146 = vmatpush1.bf16.msra.mxu0 0
  %147 = vmatprep.subr.bf16.mxu0 0
  %148 = vmatpush1.bf16.msra.mxu0 0
  %149 = vmatprep.subr.bf16.mxu0 0
  %150 = vmatpush1.bf16.msra.mxu0 0
  %151 = vmatprep.subr.bf16.mxu0 0
  %152 = vmatpush1.bf16.msra.mxu0 0
  %153 = vmatprep.subr.bf16.mxu0 0
  %154 = vmatpush1.bf16.msra.mxu0 0
  %155 = vmatprep.subr.bf16.mxu0 0
  %156 = vmatpush1.bf16.msra.mxu0 0
  %157 = vmatprep.subr.bf16.mxu0 0
  %158 = vmatpush1.bf16.msra.mxu0 0
  %159 = vmatprep.subr.bf16.mxu0 0
  %160 = vmatpush1.bf16.msra.mxu0 0
  %161 = vmatprep.subr.bf16.mxu0 0
  %162 = vmatpush1.bf16.msra.mxu0 0
  %163 = vmatprep.subr.bf16.mxu0 0
  %164 = vmatpush1.bf16.msra.mxu0 0
  %165 = vmatprep.mubr.bf16.mxu0 0
  %166 = vmatmul.mubr.bf16.gmra.mrb[0].mxu0 %v86
  %v167 = vpop.f32.mrb[0].mxu0
  %v168 = vadd.f32 %v76, %v167
  %v169 = vpop.f32.mrb[0].mxu0
  %v170 = vpop.f32.mrb[0].mxu0
  %v171 = vadd.f32 %v76, %v170
  %v172 = vpop.f32.mrb[0].mxu0
  %173 = vmatprep.mubr.bf16.mxu0 0
  %174 = vmatmul.mubr.bf16.gmra.mrb[0].mxu0 %v89
  %v175 = vpop.f32.mrb[0].mxu0
  %v176 = vadd.f32 %v76, %v175
  %v177 = vpop.f32.mrb[0].mxu0
  %v178 = vpop.f32.mrb[0].mxu0
  %v179 = vadd.f32 %v76, %v178
  %v180 = vpop.f32.mrb[0].mxu0
  %181 = vmatprep.mubr.bf16.mxu0 0
  %182 = vmatmul.mubr.bf16.gmra.mrb[0].mxu0 %v92
  %v183 = vpop.f32.mrb[0].mxu0
  %v184 = vadd.f32 %v76, %v183
  %v185 = vpop.f32.mrb[0].mxu0
  %v186 = vpop.f32.mrb[0].mxu0
  %v187 = vadd.f32 %v76, %v186
  %v188 = vpop.f32.mrb[0].mxu0
  %189 = vmatprep.mubr.bf16.mxu0 0
  %190 = vmatmul.mubr.bf16.gmra.mrb[0].mxu0 %v95
  %v191 = vpop.f32.mrb[0].mxu0
  %v192 = vadd.f32 %v76, %v191
  %v193 = vpop.f32.mrb[0].mxu0
  %v194 = vpop.f32.mrb[0].mxu0
  %v195 = vadd.f32 %v76, %v194
  %v196 = vpop.f32.mrb[0].mxu0
  %197 = vmatprep.mubr.bf16.mxu0 0
  %198 = vmatmul.mubr.bf16.gmra.mrb[0].mxu0 %v98
  %v199 = vpop.f32.mrb[0].mxu0
  %v200 = vadd.f32 %v76, %v199
  %v201 = vpop.f32.mrb[0].mxu0
  %v202 = vpop.f32.mrb[0].mxu0
  %v203 = vadd.f32 %v76, %v202
  %v204 = vpop.f32.mrb[0].mxu0
  %205 = vmatprep.mubr.bf16.mxu0 0
  %206 = vmatmul.mubr.bf16.gmra.mrb[0].mxu0 %v101
  %v207 = vpop.f32.mrb[0].mxu0
  %v208 = vadd.f32 %v76, %v207
  %v209 = vpop.f32.mrb[0].mxu0
  %v210 = vpop.f32.mrb[0].mxu0
  %v211 = vadd.f32 %v76, %v210
  %v212 = vpop.f32.mrb[0].mxu0
  %213 = vmatprep.mubr.bf16.mxu0 0
  %214 = vmatmul.mubr.bf16.gmra.mrb[0].mxu0 %v104
  %v215 = vpop.f32.mrb[0].mxu0
  %v216 = vadd.f32 %v76, %v215
  %v217 = vpop.f32.mrb[0].mxu0
  %v218 = vpop.f32.mrb[0].mxu0
  %v219 = vadd.f32 %v76, %v218
  %v220 = vpop.f32.mrb[0].mxu0
  %221 = vmatprep.mubr.bf16.mxu0 0
  %222 = vmatmul.mubr.bf16.gmra.mrb[0].mxu0 %v107
  %v223 = vpop.f32.mrb[0].mxu0
  %v224 = vadd.f32 %v76, %v223
  %v225 = vpop.f32.mrb[0].mxu0
  %v226 = vpop.f32.mrb[0].mxu0
  %v227 = vadd.f32 %v76, %v226
  %v228 = vpop.f32.mrb[0].mxu0
  %229 = vmatprep.mubr.bf16.mxu0 0
  %230 = vmatmul.mubr.bf16.gmra.mrb[0].mxu0 %v110
  %v231 = vpop.f32.mrb[0].mxu0
  %v232 = vadd.f32 %v76, %v231
  %v233 = vpop.f32.mrb[0].mxu0
  %v234 = vpop.f32.mrb[0].mxu0
  %v235 = vadd.f32 %v76, %v234
  %v236 = vpop.f32.mrb[0].mxu0
  %237 = vmatprep.mubr.bf16.mxu0 0
  %238 = vmatmul.mubr.bf16.gmra.mrb[0].mxu0 %v113
  %v239 = vpop.f32.mrb[0].mxu0
  %v240 = vadd.f32 %v76, %v239
  %v241 = vpop.f32.mrb[0].mxu0
  %v242 = vpop.f32.mrb[0].mxu0
  %v243 = vadd.f32 %v76, %v242
  %v244 = vpop.f32.mrb[0].mxu0
  %245 = vmatprep.mubr.bf16.mxu0 0
  %246 = vmatmul.mubr.bf16.gmra.mrb[0].mxu0 %v116
  %v247 = vpop.f32.mrb[0].mxu0
  %v248 = vadd.f32 %v76, %v247
  %v249 = vpop.f32.mrb[0].mxu0
  %v250 = vpop.f32.mrb[0].mxu0
  %v251 = vadd.f32 %v76, %v250
  %v252 = vpop.f32.mrb[0].mxu0
  %253 = vmatprep.mubr.bf16.mxu0 0
  %254 = vmatmul.mubr.bf16.gmra.mrb[0].mxu0 %v119
  %v255 = vpop.f32.mrb[0].mxu0
  %v256 = vadd.f32 %v76, %v255
  %v257 = vpop.f32.mrb[0].mxu0
  %v258 = vpop.f32.mrb[0].mxu0
  %v259 = vadd.f32 %v76, %v258
  %v260 = vpop.f32.mrb[0].mxu0
  %261 = vmatprep.mubr.bf16.mxu0 0
  %262 = vmatmul.mubr.bf16.gmra.mrb[0].mxu0 %v122
  %v263 = vpop.f32.mrb[0].mxu0
  %v264 = vadd.f32 %v76, %v263
  %v265 = vpop.f32.mrb[0].mxu0
  %v266 = vpop.f32.mrb[0].mxu0
  %v267 = vadd.f32 %v76, %v266
  %v268 = vpop.f32.mrb[0].mxu0
  %269 = vmatprep.mubr.bf16.mxu0 0
  %270 = vmatmul.mubr.bf16.gmra.mrb[0].mxu0 %v125
  %v271 = vpop.f32.mrb[0].mxu0
  %v272 = vadd.f32 %v76, %v271
  %v273 = vpop.f32.mrb[0].mxu0
  %v274 = vpop.f32.mrb[0].mxu0
  %v275 = vadd.f32 %v76, %v274
  %v276 = vpop.f32.mrb[0].mxu0
  %277 = vmatprep.mubr.bf16.mxu0 0
  %278 = vmatmul.mubr.bf16.gmra.mrb[0].mxu0 %v128
  %v279 = vpop.f32.mrb[0].mxu0
  %v280 = vadd.f32 %v76, %v279
  %v281 = vpop.f32.mrb[0].mxu0
  %v282 = vpop.f32.mrb[0].mxu0
  %v283 = vadd.f32 %v76, %v282
  %v284 = vpop.f32.mrb[0].mxu0
  %285 = vmatprep.mubr.bf16.mxu0 0
  %286 = vmatmul.mubr.bf16.gmra.mrb[0].mxu0 %v131
  %v287 = vpop.f32.mrb[0].mxu0
  %v288 = vadd.f32 %v76, %v287
  %v289 = vpop.f32.mrb[0].mxu0
  %v290 = vpop.f32.mrb[0].mxu0
  %v291 = vadd.f32 %v76, %v290
  %v292 = vpop.f32.mrb[0].mxu0
  %293 = vdwg.mxu0
  %v294 = vmax.f32 %v168, 0.0
  %v295 = vmax.f32 %v171, 0.0
  %v296 = vmax.f32 %v176, 0.0
  %v297 = vmax.f32 %v179, 0.0
  %v298 = vmax.f32 %v184, 0.0
  %v299 = vmax.f32 %v187, 0.0
  %v300 = vmax.f32 %v192, 0.0
  %v301 = vmax.f32 %v195, 0.0
  %v302 = vmax.f32 %v200, 0.0
  %v303 = vmax.f32 %v203, 0.0
  %v304 = vmax.f32 %v208, 0.0
  %v305 = vmax.f32 %v211, 0.0
  %v306 = vmax.f32 %v216, 0.0
  %v307 = vmax.f32 %v219, 0.0
  %v308 = vmax.f32 %v224, 0.0
  %v309 = vmax.f32 %v227, 0.0
  %v310 = vmax.f32 %v232, 0.0
  %v311 = vmax.f32 %v235, 0.0
  %v312 = vmax.f32 %v240, 0.0
  %v313 = vmax.f32 %v243, 0.0
  %v314 = vmax.f32 %v248, 0.0
  %v315 = vmax.f32 %v251, 0.0
  %v316 = vmax.f32 %v256, 0.0
  %v317 = vmax.f32 %v259, 0.0
  %v318 = vmax.f32 %v264, 0.0
  %v319 = vmax.f32 %v267, 0.0
  %v320 = vmax.f32 %v272, 0.0
  %v321 = vmax.f32 %v275, 0.0
  %v322 = vmax.f32 %v280, 0.0
  %v323 = vmax.f32 %v283, 0.0
  %v324 = vmax.f32 %v288, 0.0
  %v325 = vmax.f32 %v291, 0.0
  %v326 = vpack.c.bf16 %v295, %v294
  %v327 = vpack.c.bf16 %v297, %v296
  %v328 = vpack.c.bf16 %v299, %v298
  %v329 = vpack.c.bf16 %v301, %v300
  %v330 = vpack.c.bf16 %v303, %v302
  %v331 = vpack.c.bf16 %v305, %v304
  %v332 = vpack.c.bf16 %v307, %v306
  %v333 = vpack.c.bf16 %v309, %v308
  %v334 = vpack.c.bf16 %v311, %v310
  %v335 = vpack.c.bf16 %v313, %v312
  %v336 = vpack.c.bf16 %v315, %v314
  %v337 = vpack.c.bf16 %v317, %v316
  %v338 = vpack.c.bf16 %v319, %v318
  %v339 = vpack.c.bf16 %v321, %v320
  %v340 = vpack.c.bf16 %v323, %v322
  %v341 = vpack.c.bf16 %v325, %v324
  %v342 = vld [vmem:[%s3] sm:$0xf]
  %v343 = vld [vmem:[%s3 + $0x4] sm:$0xf]
  %v344 = vld [vmem:[%s3 + $0x8] sm:$0xf]
  %v345 = vld [vmem:[%s3 + $0xc] sm:$0xf]
  %v346 = vld [vmem:[%s4] sm:$0x1]
  %v348 = vlaneseq
  %v349 = vshrl.u32 %v348, 7
  %v350 = vsub.s32 0, %v349
  %v351 = vrot.slane %v346, %v350
  %v357 = vunpack.c.l.b16 %v342
  %v358 = vunpack.c.l.b16 %v343
  %v359 = vunpack.c.l.b16 %v344
  %v360 = vunpack.c.l.b16 %v345
  %v361 = vpack.c.b16 %v358, %v357
  %v362 = vpack.c.b16 %v360, %v359
  %vm365 = vcmask 261120
  %v367 = vsel %vm365, %v326, 0
  %v370 = vsel %vm365, %v327, 0
  %v373 = vsel %vm365, %v328, 0
  %v376 = vsel %vm365, %v329, 0
  %v379 = vsel %vm365, %v330, 0
  %v382 = vsel %vm365, %v331, 0
  %v385 = vsel %vm365, %v332, 0
  %v388 = vsel %vm365, %v333, 0
  %v391 = vsel %vm365, %v334, 0
  %v394 = vsel %vm365, %v335, 0
  %v397 = vsel %vm365, %v336, 0
  %v400 = vsel %vm365, %v337, 0
  %v403 = vsel %vm365, %v338, 0
  %v406 = vsel %vm365, %v339, 0
  %v409 = vsel %vm365, %v340, 0
  %v412 = vsel %vm365, %v341, 0
  %414 = vmatprep.subr.bf16.mxu0 0
  %415 = vmatpush1.bf16.msra.mxu0 %v361
  %416 = vmatprep.subr.bf16.mxu0 0
  %417 = vmatpush1.bf16.msra.mxu0 %v362
  %418 = vmatprep.subr.bf16.mxu0 0
  %419 = vmatpush1.bf16.msra.mxu0 0
  %420 = vmatprep.subr.bf16.mxu0 0
  %421 = vmatpush1.bf16.msra.mxu0 0
  %422 = vmatprep.subr.bf16.mxu0 0
  %423 = vmatpush1.bf16.msra.mxu0 0
  %424 = vmatprep.subr.bf16.mxu0 0
  %425 = vmatpush1.bf16.msra.mxu0 0
  %426 = vmatprep.subr.bf16.mxu0 0
  %427 = vmatpush1.bf16.msra.mxu0 0
  %428 = vmatprep.subr.bf16.mxu0 0
  %429 = vmatpush1.bf16.msra.mxu0 0
  %430 = vmatprep.subr.bf16.mxu0 0
  %431 = vmatpush1.bf16.msra.mxu0 0
  %432 = vmatprep.subr.bf16.mxu0 0
  %433 = vmatpush1.bf16.msra.mxu0 0
  %434 = vmatprep.subr.bf16.mxu0 0
  %435 = vmatpush1.bf16.msra.mxu0 0
  %436 = vmatprep.subr.bf16.mxu0 0
  %437 = vmatpush1.bf16.msra.mxu0 0
  %438 = vmatprep.subr.bf16.mxu0 0
  %439 = vmatpush1.bf16.msra.mxu0 0
  %440 = vmatprep.subr.bf16.mxu0 0
  %441 = vmatpush1.bf16.msra.mxu0 0
  %442 = vmatprep.subr.bf16.mxu0 0
  %443 = vmatpush1.bf16.msra.mxu0 0
  %444 = vmatprep.subr.bf16.mxu0 0
  %445 = vmatpush1.bf16.msra.mxu0 0
  %446 = vmatprep.mubr.bf16.mxu0 0
  %447 = vmatmul.mubr.bf16.gmra.mrb[0].mxu0 %v367
  %v448 = vpop.f32.mrb[0].mxu0
  %v449 = vadd.f32 %v351, %v448
  %v450 = vpop.f32.mrb[0].mxu0
  %v451 = vpop.f32.mrb[0].mxu0
  %v452 = vadd.f32 %v351, %v451
  %v453 = vpop.f32.mrb[0].mxu0
  %454 = vmatprep.mubr.bf16.mxu0 0
  %455 = vmatmul.mubr.bf16.gmra.mrb[0].mxu0 %v370
  %v456 = vpop.f32.mrb[0].mxu0
  %v457 = vadd.f32 %v351, %v456
  %v458 = vpop.f32.mrb[0].mxu0
  %v459 = vpop.f32.mrb[0].mxu0
  %v460 = vadd.f32 %v351, %v459
  %v461 = vpop.f32.mrb[0].mxu0
  %462 = vmatprep.mubr.bf16.mxu0 0
  %463 = vmatmul.mubr.bf16.gmra.mrb[0].mxu0 %v373
  %v464 = vpop.f32.mrb[0].mxu0
  %v465 = vadd.f32 %v351, %v464
  %v466 = vpop.f32.mrb[0].mxu0
  %v467 = vpop.f32.mrb[0].mxu0
  %v468 = vadd.f32 %v351, %v467
  %v469 = vpop.f32.mrb[0].mxu0
  %470 = vmatprep.mubr.bf16.mxu0 0
  %471 = vmatmul.mubr.bf16.gmra.mrb[0].mxu0 %v376
  %v472 = vpop.f32.mrb[0].mxu0
  %v473 = vadd.f32 %v351, %v472
  %v474 = vpop.f32.mrb[0].mxu0
  %v475 = vpop.f32.mrb[0].mxu0
  %v476 = vadd.f32 %v351, %v475
  %v477 = vpop.f32.mrb[0].mxu0
  %478 = vmatprep.mubr.bf16.mxu0 0
  %479 = vmatmul.mubr.bf16.gmra.mrb[0].mxu0 %v379
  %v480 = vpop.f32.mrb[0].mxu0
  %v481 = vadd.f32 %v351, %v480
  %v482 = vpop.f32.mrb[0].mxu0
  %v483 = vpop.f32.mrb[0].mxu0
  %v484 = vadd.f32 %v351, %v483
  %v485 = vpop.f32.mrb[0].mxu0
  %486 = vmatprep.mubr.bf16.mxu0 0
  %487 = vmatmul.mubr.bf16.gmra.mrb[0].mxu0 %v382
  %v488 = vpop.f32.mrb[0].mxu0
  %v489 = vadd.f32 %v351, %v488
  %v490 = vpop.f32.mrb[0].mxu0
  %v491 = vpop.f32.mrb[0].mxu0
  %v492 = vadd.f32 %v351, %v491
  %v493 = vpop.f32.mrb[0].mxu0
  %494 = vmatprep.mubr.bf16.mxu0 0
  %495 = vmatmul.mubr.bf16.gmra.mrb[0].mxu0 %v385
  %v496 = vpop.f32.mrb[0].mxu0
  %v497 = vadd.f32 %v351, %v496
  %v498 = vpop.f32.mrb[0].mxu0
  %v499 = vpop.f32.mrb[0].mxu0
  %v500 = vadd.f32 %v351, %v499
  %v501 = vpop.f32.mrb[0].mxu0
  %502 = vmatprep.mubr.bf16.mxu0 0
  %503 = vmatmul.mubr.bf16.gmra.mrb[0].mxu0 %v388
  %v504 = vpop.f32.mrb[0].mxu0
  %v505 = vadd.f32 %v351, %v504
  %v506 = vpop.f32.mrb[0].mxu0
  %v507 = vpop.f32.mrb[0].mxu0
  %v508 = vadd.f32 %v351, %v507
  %v509 = vpop.f32.mrb[0].mxu0
  %510 = vmatprep.mubr.bf16.mxu0 0
  %511 = vmatmul.mubr.bf16.gmra.mrb[0].mxu0 %v391
  %v512 = vpop.f32.mrb[0].mxu0
  %v513 = vadd.f32 %v351, %v512
  %v514 = vpop.f32.mrb[0].mxu0
  %v515 = vpop.f32.mrb[0].mxu0
  %v516 = vadd.f32 %v351, %v515
  %v517 = vpop.f32.mrb[0].mxu0
  %518 = vmatprep.mubr.bf16.mxu0 0
  %519 = vmatmul.mubr.bf16.gmra.mrb[0].mxu0 %v394
  %v520 = vpop.f32.mrb[0].mxu0
  %v521 = vadd.f32 %v351, %v520
  %v522 = vpop.f32.mrb[0].mxu0
  %v523 = vpop.f32.mrb[0].mxu0
  %v524 = vadd.f32 %v351, %v523
  %v525 = vpop.f32.mrb[0].mxu0
  %526 = vmatprep.mubr.bf16.mxu0 0
  %527 = vmatmul.mubr.bf16.gmra.mrb[0].mxu0 %v397
  %v528 = vpop.f32.mrb[0].mxu0
  %v529 = vadd.f32 %v351, %v528
  %v530 = vpop.f32.mrb[0].mxu0
  %v531 = vpop.f32.mrb[0].mxu0
  %v532 = vadd.f32 %v351, %v531
  %v533 = vpop.f32.mrb[0].mxu0
  %534 = vmatprep.mubr.bf16.mxu0 0
  %535 = vmatmul.mubr.bf16.gmra.mrb[0].mxu0 %v400
  %v536 = vpop.f32.mrb[0].mxu0
  %v537 = vadd.f32 %v351, %v536
  %v538 = vpop.f32.mrb[0].mxu0
  %v539 = vpop.f32.mrb[0].mxu0
  %v540 = vadd.f32 %v351, %v539
  %v541 = vpop.f32.mrb[0].mxu0
  %542 = vmatprep.mubr.bf16.mxu0 0
  %543 = vmatmul.mubr.bf16.gmra.mrb[0].mxu0 %v403
  %v544 = vpop.f32.mrb[0].mxu0
  %v545 = vadd.f32 %v351, %v544
  %v546 = vpop.f32.mrb[0].mxu0
  %v547 = vpop.f32.mrb[0].mxu0
  %v548 = vadd.f32 %v351, %v547
  %v549 = vpop.f32.mrb[0].mxu0
  %550 = vmatprep.mubr.bf16.mxu0 0
  %551 = vmatmul.mubr.bf16.gmra.mrb[0].mxu0 %v406
  %v552 = vpop.f32.mrb[0].mxu0
  %v553 = vadd.f32 %v351, %v552
  %v554 = vpop.f32.mrb[0].mxu0
  %v555 = vpop.f32.mrb[0].mxu0
  %v556 = vadd.f32 %v351, %v555
  %v557 = vpop.f32.mrb[0].mxu0
  %558 = vmatprep.mubr.bf16.mxu0 0
  %559 = vmatmul.mubr.bf16.gmra.mrb[0].mxu0 %v409
  %v560 = vpop.f32.mrb[0].mxu0
  %v561 = vadd.f32 %v351, %v560
  %v562 = vpop.f32.mrb[0].mxu0
  %v563 = vpop.f32.mrb[0].mxu0
  %v564 = vadd.f32 %v351, %v563
  %v565 = vpop.f32.mrb[0].mxu0
  %566 = vmatprep.mubr.bf16.mxu0 0
  %567 = vmatmul.mubr.bf16.gmra.mrb[0].mxu0 %v412
  %v568 = vpop.f32.mrb[0].mxu0
  %v569 = vadd.f32 %v351, %v568
  %v570 = vpop.f32.mrb[0].mxu0
  %v571 = vpop.f32.mrb[0].mxu0
  %v572 = vadd.f32 %v351, %v571
  %v573 = vpop.f32.mrb[0].mxu0
  %574 = vdwg.mxu0
  %vm575 = vcmask 64512
  %576 = vst.msk [vmem:[%s5] sm:$0xff] %vm575, %v449
  %577 = vst.msk [vmem:[%s5 + $0x8] sm:$0xff] %vm575, %v452
  %578 = vst.msk [vmem:[%s5 + $0x10] sm:$0xff] %vm575, %v457
  %579 = vst.msk [vmem:[%s5 + $0x18] sm:$0xff] %vm575, %v460
  %580 = vst.msk [vmem:[%s5 + $0x20] sm:$0xff] %vm575, %v465
  %581 = vst.msk [vmem:[%s5 + $0x28] sm:$0xff] %vm575, %v468
  %582 = vst.msk [vmem:[%s5 + $0x30] sm:$0xff] %vm575, %v473
  %583 = vst.msk [vmem:[%s5 + $0x38] sm:$0xff] %vm575, %v476
  %584 = vst.msk [vmem:[%s5 + $0x40] sm:$0xff] %vm575, %v481
  %585 = vst.msk [vmem:[%s5 + $0x48] sm:$0xff] %vm575, %v484
  %586 = vst.msk [vmem:[%s5 + $0x50] sm:$0xff] %vm575, %v489
  %587 = vst.msk [vmem:[%s5 + $0x58] sm:$0xff] %vm575, %v492
  %588 = vst.msk [vmem:[%s5 + $0x60] sm:$0xff] %vm575, %v497
  %589 = vst.msk [vmem:[%s5 + $0x68] sm:$0xff] %vm575, %v500
  %590 = vst.msk [vmem:[%s5 + $0x70] sm:$0xff] %vm575, %v505
  %591 = vst.msk [vmem:[%s5 + $0x78] sm:$0xff] %vm575, %v508
  %592 = vst.msk [vmem:[%s5 + $0x80] sm:$0xff] %vm575, %v513
  %593 = vst.msk [vmem:[%s5 + $0x88] sm:$0xff] %vm575, %v516
  %594 = vst.msk [vmem:[%s5 + $0x90] sm:$0xff] %vm575, %v521
  %595 = vst.msk [vmem:[%s5 + $0x98] sm:$0xff] %vm575, %v524
  %596 = vst.msk [vmem:[%s5 + $0xa0] sm:$0xff] %vm575, %v529
  %597 = vst.msk [vmem:[%s5 + $0xa8] sm:$0xff] %vm575, %v532
  %598 = vst.msk [vmem:[%s5 + $0xb0] sm:$0xff] %vm575, %v537
  %599 = vst.msk [vmem:[%s5 + $0xb8] sm:$0xff] %vm575, %v540
  %600 = vst.msk [vmem:[%s5 + $0xc0] sm:$0xff] %vm575, %v545
  %601 = vst.msk [vmem:[%s5 + $0xc8] sm:$0xff] %vm575, %v548
  %602 = vst.msk [vmem:[%s5 + $0xd0] sm:$0xff] %vm575, %v553
  %603 = vst.msk [vmem:[%s5 + $0xd8] sm:$0xff] %vm575, %v556
  %604 = vst.msk [vmem:[%s5 + $0xe0] sm:$0xff] %vm575, %v561
  %605 = vst.msk [vmem:[%s5 + $0xe8] sm:$0xff] %vm575, %v564
  %606 = vst.msk [vmem:[%s5 + $0xf0] sm:$0xff] %vm575, %v569
  %607 = vst.msk [vmem:[%s5 + $0xf8] sm:$0xff] %vm575, %v572
  // Predicated region
  $region22: #{mlp_forward.1} parent=0 // pred_check
    _
  $region23: #{mlp_forward.1} parent=0 // pred_check_branch
    %609 = sbr.rel (0) target = $region25
  $region24: #{mlp_forward.1} parent=0 // pred_region
    _
  $region25: #{mlp_forward.1} parent=0 // pred_fallthru
    _
  // Predicated region
  $region26: #{mlp_forward.1} parent=0 // pred_check
    _
  $region27: #{mlp_forward.1} parent=0 // pred_check_branch
    %611 = sbr.rel (0) target = $region29
  $region28: #{mlp_forward.1} parent=0 // pred_region
    _
  $region29: #{mlp_forward.1} parent=0 // pred_fallthru
    _

</llo_original>
